<compile_context>
chip_gen: v7x
topology: tpu7x:2x2x1
jax: 0.10.0
libtpu: 0.0.40
codegen_flags: <defaults>
</compile_context>

<pallas_src>
import functools

import jax
import jax.numpy as jnp
from jax.experimental import pallas as pl
from jax.experimental.pallas import tpu as pltpu

BN_EPS = 1e-5
LEAKY_SLOPE = 0.01               # nn.LeakyReLU() default negative_slope
LANE = 128                       # TPU lane width (last-dim tiling)
SUBLANE = 8                      # TPU sublane width (second-to-last-dim tiling)
X_CACHE_BUDGET_BYTES = 8 << 20   # conservative VMEM budget across v5e/v6e/v7x


def _round_up(x, m):
    return (x + m - 1) // m * m


def _mod1_encoder_kernel(use_cache,
                         count_ref,
                         x_ref, w1_ref, gamma_ref, beta_ref, w2_ref, b2_ref,
                         out_ref,
                         xcache_ref, sum_ref, sumsq_ref, scale_ref, shift_ref):
    """Two-pass kernel over grid = (phase, row_tile).

    phase 0: accumulate per-feature sum / sum-of-squares of h = x @ W1 across
             row tiles; on the last tile fold the batch statistics + BN affine
             into one (scale, shift).  Optionally stash the bf16 x tile in a
             persistent VMEM cache so phase 1 never re-reads x from HBM.
    phase 1: recompute h (from the cache or from the resident x buffer), apply
             scale/shift + LeakyReLU, run Linear2, write the output tile.
    """
    phase = pl.program_id(0)
    tile = pl.program_id(1)
    last_tile = pl.num_programs(1) - 1

    @pl.when(phase == 0)
    def _stats_pass():
        xb = x_ref[...]                                    # bf16 (tile_n, in_dim)
        # Linear1 on the MXU: bf16 operands, f32 accumulation.  b1 intentionally
        # omitted: it is cancelled exactly by training-mode BatchNorm's
        # batch-mean subtraction (which also makes zero row-padding exact).
        h = jnp.dot(xb, w1_ref[...], preferred_element_type=jnp.float32)

        @pl.when(tile == 0)
        def _init():
            sum_ref[...] = jnp.zeros_like(sum_ref)
            sumsq_ref[...] = jnp.zeros_like(sumsq_ref)

        # Sublane (axis=0) reductions land on the XLU; accumulate in f32.
        sum_ref[...] += jnp.sum(h, axis=0, keepdims=True)
        sumsq_ref[...] += jnp.sum(h * h, axis=0, keepdims=True)

        if use_cache:
            xcache_ref[tile] = xb                          # stash for phase 1

        @pl.when(tile == last_tile)
        def _finalize():
            cnt = count_ref[0].astype(jnp.float32)         # true batch size
            mean = sum_ref[...] / cnt
            var = jnp.maximum(sumsq_ref[...] / cnt - mean * mean, 0.0)
            scale = gamma_ref[...] * jax.lax.rsqrt(var + BN_EPS)
            scale_ref[...] = scale
            shift_ref[...] = beta_ref[...] - mean * scale

    @pl.when(phase == 1)
    def _apply_pass():
        if use_cache:
            xb = xcache_ref[tile]                          # no HBM re-read of x
        else:
            xb = x_ref[...]
        h = jnp.dot(xb, w1_ref[...], preferred_element_type=jnp.float32)
        # Folded BatchNorm affine: 2 VPU ops / element instead of ~4.
        h1 = h * scale_ref[...] + shift_ref[...]
        # LeakyReLU via max (slope in [0,1)): no compare/select mask vreg.
        h2 = jnp.maximum(h1, LEAKY_SLOPE * h1)
        z = jnp.dot(h2.astype(jnp.bfloat16), w2_ref[...],
                    preferred_element_type=jnp.float32) + b2_ref[...]
        out_ref[...] = z.astype(out_ref.dtype)


def mod1_encoder(x, w1_t, b1, gamma, beta, w2_t, b2, *,
                 row_tile=1024, use_x_cache=None):
    """Forward pass of Mod1Encoder (training-mode BN, batch statistics).

    x: (N, in_dim) float32.  Weights are pre-transposed: w1_t (in_dim, hidden),
    w2_t (hidden, latent).  Returns (N, latent) float32 embeddings.
    `use_x_cache=None` auto-enables the cross-phase VMEM x-cache when it fits.
    """
    del b1  # exactly cancelled by BatchNorm's batch-mean subtraction
    n, in_dim = x.shape
    hidden = w1_t.shape[1]
    latent = w2_t.shape[1]

    # Only the hidden dim is lane-padded (resident weights / BN vectors).
    # x keeps its true in_dim as the full last dim of its block (legal, and it
    # avoids 4x-inflating the dominant HBM stream); latent stays the full last
    # dim of W2 / b2 / the output so writeback traffic is minimal.
    hid_p = _round_up(hidden, LANE)

    # Large row tiles amortize the ~0.35 us per-grid-step overhead; the batch is
    # row-padded with zeros (exact for BN thanks to the dropped b1).
    tile_n = max(SUBLANE, min(row_tile, _round_up(n, SUBLANE)))
    n_pad = _round_up(n, tile_n)
    n_tiles = n_pad // tile_n

    # bf16 cast folded into the (row-only) pad of x: halves every HBM read.
    x_p = jnp.pad(x.astype(jnp.bfloat16), ((0, n_pad - n), (0, 0)))
    w1_p = jnp.pad(w1_t, ((0, 0), (0, hid_p - hidden))).astype(jnp.bfloat16)
    w2_p = jnp.pad(w2_t, ((0, hid_p - hidden), (0, 0))).astype(jnp.bfloat16)
    gamma_p = jnp.pad(gamma.reshape(1, hidden).astype(jnp.float32),
                      ((0, 0), (0, hid_p - hidden)))
    beta_p = jnp.pad(beta.reshape(1, hidden).astype(jnp.float32),
                     ((0, 0), (0, hid_p - hidden)))
    b2_p = b2.reshape(1, latent).astype(jnp.float32)

    # Cache x in VMEM across phases iff it fits a conservative budget (then the
    # HBM read of x happens exactly once).  With a single row tile the x buffer
    # is already reused across phases, so the cache buys nothing.
    lane_in = _round_up(in_dim, LANE)          # VMEM internal lane padding
    lane_lat = _round_up(latent, LANE)
    x_cache_bytes = n_pad * lane_in * 2
    if use_x_cache is None:
        use_x_cache = x_cache_bytes <= X_CACHE_BUDGET_BYTES
    use_x_cache = bool(use_x_cache) and n_tiles > 1

    if use_x_cache:
        # Phase 1 pins x's block index to the LAST phase-0 index, so Pallas
        # issues no new x DMA at all; the kernel reads the VMEM cache instead.
        x_index_map = lambda p, t, n_ref: ((1 - p) * t + p * (n_tiles - 1), 0)
        cache_shape = (n_tiles, tile_n, in_dim)
    else:
        x_index_map = lambda p, t, n_ref: (t, 0)
        cache_shape = (1, SUBLANE, in_dim)     # unused dummy scratch

    in_specs = [
        pl.BlockSpec((tile_n, in_dim), x_index_map),                # x tile
        pl.BlockSpec((in_dim, hid_p), lambda p, t, n_ref: (0, 0)),  # W1^T (resident)
        pl.BlockSpec((1, hid_p), lambda p, t, n_ref: (0, 0)),       # gamma
        pl.BlockSpec((1, hid_p), lambda p, t, n_ref: (0, 0)),       # beta
        pl.BlockSpec((hid_p, latent), lambda p, t, n_ref: (0, 0)),  # W2^T (resident)
        pl.BlockSpec((1, latent), lambda p, t, n_ref: (0, 0)),      # b2
    ]
    # Output block index is pinned at 0 during phase 0 and never written there.
    # Pallas only writes an output block back to HBM when its block index
    # changes, and the first phase-1 step (which shares block index 0)
    # overwrites the VMEM buffer with valid data before the first index change,
    # so no uninitialized data ever reaches HBM.
    out_specs = pl.BlockSpec((tile_n, latent), lambda p, t, n_ref: (p * t, 0))

    scratch_shapes = [
        pltpu.VMEM(cache_shape, jnp.bfloat16),   # cross-phase x cache (or dummy)
        pltpu.VMEM((1, hid_p), jnp.float32),     # sum(h)
        pltpu.VMEM((1, hid_p), jnp.float32),     # sum(h*h)
        pltpu.VMEM((1, hid_p), jnp.float32),     # folded BN scale
        pltpu.VMEM((1, hid_p), jnp.float32),     # folded BN shift
    ]

    # Rough VMEM estimate (double-buffered tiles + residents + cache), with 2x
    # headroom and a cap leaving room on v7x's 64 MiB physical VMEM.
    est_vmem = (2 * tile_n * lane_in * 2            # x tiles (bf16, 2 buffers)
                + 2 * tile_n * lane_lat * 4         # out tiles (f32, 2 buffers)
                + 2 * _round_up(in_dim, 16) * hid_p * 2   # W1
                + 2 * hid_p * lane_lat * 2                # W2
                + 8 * SUBLANE * hid_p * 4                 # BN vectors / scratch
                + (n_tiles * tile_n * lane_in * 2 if use_x_cache else 0))
    vmem_limit = int(min(48 << 20, max(32 << 20, 2 * est_vmem)))

    kernel = functools.partial(_mod1_encoder_kernel, use_x_cache)

    # TODO(synk): for v7x, emit per-tile partial (sum, sumsq) in the stats pass
    # so the row-tile axis can be marked "parallel" across its 2 TensorCores;
    # the fused single-accumulator design keeps both grid axes "arbitrary".
    out_p = pl.pallas_call(
        kernel,
        out_shape=jax.ShapeDtypeStruct((n_pad, latent), jnp.float32),
        grid_spec=pltpu.PrefetchScalarGridSpec(
            num_scalar_prefetch=1,                # true batch size (SMEM scalar)
            grid=(2, n_tiles),                    # (phase: stats/apply, row tile)
            in_specs=in_specs,
            out_specs=out_specs,
            scratch_shapes=scratch_shapes,
        ),
        compiler_params=pltpu.CompilerParams(
            dimension_semantics=("arbitrary", "arbitrary"),
            vmem_limit_bytes=vmem_limit),
    )(jnp.array([n], jnp.int32), x_p, w1_p, gamma_p, beta_p, w2_p, b2_p)

    return out_p[:n]


def init_params(key, in_dim, hidden_dim, latent_dim):
    """Deterministic parameter init (PyTorch-style uniform bounds)."""
    k1, k2, k3, k4 = jax.random.split(key, 4)
    bound1 = 1.0 / jnp.sqrt(in_dim)
    bound2 = 1.0 / jnp.sqrt(hidden_dim)
    # Linear weights stored pre-transposed: (in, out).
    w1_t = jax.random.uniform(k1, (in_dim, hidden_dim), jnp.float32,
                              -bound1, bound1)
    b1 = jax.random.uniform(k2, (1, hidden_dim), jnp.float32, -bound1, bound1)
    gamma = jnp.ones((1, hidden_dim), jnp.float32)   # BatchNorm1d weight
    beta = jnp.zeros((1, hidden_dim), jnp.float32)   # BatchNorm1d bias
    w2_t = jax.random.uniform(k3, (hidden_dim, latent_dim), jnp.float32,
                              -bound2, bound2)
    b2 = jax.random.uniform(k4, (1, latent_dim), jnp.float32, -bound2, bound2)
    return w1_t, b1, gamma, beta, w2_t, b2


def reference_forward(x, w1_t, b1, gamma, beta, w2_t, b2):
    """Pure-JAX f32 reference matching the PyTorch module (training-mode BN)."""
    h = x @ w1_t + b1
    mean = jnp.mean(h, axis=0, keepdims=True)
    var = jnp.mean((h - mean) ** 2, axis=0, keepdims=True)
    h1 = (h - mean) / jnp.sqrt(var + BN_EPS) * gamma + beta
    h2 = jnp.where(h1 > 0, h1, LEAKY_SLOPE * h1)
    return h2 @ w2_t + b2


if __name__ == "__main__":
    IN_DIM, HIDDEN, LATENT = 32, 64, 32
    key = jax.random.PRNGKey(0)

    # Case 1: tiny batch, single row tile (x buffer already reused across
    #         phases, cache auto-disabled).
    # Case 2: multi-tile two-pass BN + row padding with the cross-phase VMEM
    #         x-cache (200 rows -> 4 tiles of 64, padded to 256).
    # Case 3: same shapes with the cache forced off (phase 1 re-reads x from
    #         HBM), exercising the fallback path.
    cases = [
        dict(n=8, row_tile=1024, use_x_cache=None),
        dict(n=200, row_tile=64, use_x_cache=None),
        dict(n=200, row_tile=64, use_x_cache=False),
    ]
    for case in cases:
        key, kx, kp = jax.random.split(key, 3)
        x = jax.random.normal(kx, (case["n"], IN_DIM), jnp.float32)
        params = init_params(kp, IN_DIM, HIDDEN, LATENT)

        z = jax.block_until_ready(
            mod1_encoder(x, *params, row_tile=case["row_tile"],
                         use_x_cache=case["use_x_cache"]))
        z_ref = reference_forward(x, *params)

        assert z.shape == (case["n"], LATENT)
        # bf16 MXU operands (f32 accumulation) loosen agreement vs the f32
        # reference to ~1e-2 relative; 5e-2 gives comfortable margin.
        assert jnp.allclose(z, z_ref, atol=5e-2, rtol=5e-2), (
            f"mismatch vs reference for case {case}: "
            f"max abs diff = {float(jnp.max(jnp.abs(z - z_ref)))}")

    print("KERNEL_OK")
</pallas_src>

<mosaic_0001>
module attributes {stable_mosaic.version = 11 : i64} {
  func.func @_mod1_encoder_kernel(%arg0: i32, %arg1: i32, %arg2: memref<1xi32, #tpu.memory_space<smem>>, %arg3: memref<8x32xbf16, #tpu.memory_space<vmem>>, %arg4: memref<32x128xbf16, #tpu.memory_space<vmem>>, %arg5: memref<1x128xf32, #tpu.memory_space<vmem>>, %arg6: memref<1x128xf32, #tpu.memory_space<vmem>>, %arg7: memref<128x32xbf16, #tpu.memory_space<vmem>>, %arg8: memref<1x32xf32, #tpu.memory_space<vmem>>, %arg9: memref<8x32xf32, #tpu.memory_space<vmem>>, %arg10: memref<1x8x32xbf16, #tpu.memory_space<vmem>>, %arg11: memref<1x128xf32, #tpu.memory_space<vmem>>, %arg12: memref<1x128xf32, #tpu.memory_space<vmem>>, %arg13: memref<1x128xf32, #tpu.memory_space<vmem>>, %arg14: memref<1x128xf32, #tpu.memory_space<vmem>>) attributes {dimension_semantics = [#tpu.dimension_semantics<arbitrary>, #tpu.dimension_semantics<arbitrary>], iteration_bounds = array<i64: 2, 1>, scalar_prefetch = 1 : i64, scratch_operands = 5 : i64, tpu.core_type = #tpu.core_type<tc>, window_params = [{transform_indices = @transform_0, window_bounds = array<i64: 8, 32>}, {pipeline_mode = #tpu.pipeline_mode<synchronous>, transform_indices = @transform_1, window_bounds = array<i64: 32, 128>}, {pipeline_mode = #tpu.pipeline_mode<synchronous>, transform_indices = @transform_2, window_bounds = array<i64: 1, 128>}, {pipeline_mode = #tpu.pipeline_mode<synchronous>, transform_indices = @transform_3, window_bounds = array<i64: 1, 128>}, {pipeline_mode = #tpu.pipeline_mode<synchronous>, transform_indices = @transform_4, window_bounds = array<i64: 128, 32>}, {pipeline_mode = #tpu.pipeline_mode<synchronous>, transform_indices = @transform_5, window_bounds = array<i64: 1, 32>}, {transform_indices = @transform_6, window_bounds = array<i64: 8, 32>}]} {
    %c0_i32 = arith.constant 0 : i32
    %0 = arith.cmpi eq, %arg0, %c0_i32 : i32
    %1 = arith.extui %0 : i1 to i32
    %c0_i32_0 = arith.constant 0 : i32
    %2 = arith.cmpi ne, %1, %c0_i32_0 : i32
    scf.if %2 {
      %c0 = arith.constant 0 : index
      %c0_2 = arith.constant 0 : index
      %6 = vector.load %arg3[%c0, %c0_2] : memref<8x32xbf16, #tpu.memory_space<vmem>>, vector<8x32xbf16>
      %c0_3 = arith.constant 0 : index
      %c0_4 = arith.constant 0 : index
      %7 = vector.load %arg4[%c0_3, %c0_4] : memref<32x128xbf16, #tpu.memory_space<vmem>>, vector<32x128xbf16>
      %cst = arith.constant dense<0.000000e+00> : vector<8x128xf32>
      %8 = tpu.matmul %6, %7, %cst {dimension_numbers = #tpu.dot_dimension_numbers<[1], [0], [0], [1], [0, 0, 1, 1], [], []>} : vector<8x32xbf16>, vector<32x128xbf16>, vector<8x128xf32> -> vector<8x128xf32>
      %c0_i32_5 = arith.constant 0 : i32
      %9 = arith.cmpi eq, %arg1, %c0_i32_5 : i32
      %10 = arith.extui %9 : i1 to i32
      %c0_i32_6 = arith.constant 0 : i32
      %11 = arith.cmpi ne, %10, %c0_i32_6 : i32
      scf.if %11 {
        %cst_19 = arith.constant 0.000000e+00 : f32
        %26 = vector.broadcast %cst_19 : f32 to vector<1x128xf32>
        %c0_20 = arith.constant 0 : index
        %c0_21 = arith.constant 0 : index
        %27 = vector.load %arg11[%c0_20, %c0_21] : memref<1x128xf32, #tpu.memory_space<vmem>>, vector<1x128xf32>
        tpu.vector_store %arg11[%c0_20, %c0_21], %26 {strides = array<i32>} : memref<1x128xf32, #tpu.memory_space<vmem>>, vector<1x128xf32>,
        %cst_22 = arith.constant 0.000000e+00 : f32
        %28 = vector.broadcast %cst_22 : f32 to vector<1x128xf32>
        %c0_23 = arith.constant 0 : index
        %c0_24 = arith.constant 0 : index
        %29 = vector.load %arg12[%c0_23, %c0_24] : memref<1x128xf32, #tpu.memory_space<vmem>>, vector<1x128xf32>
        tpu.vector_store %arg12[%c0_23, %c0_24], %28 {strides = array<i32>} : memref<1x128xf32, #tpu.memory_space<vmem>>, vector<1x128xf32>,
      } else {
      }
      %c0_7 = arith.constant 0 : index
      %c0_8 = arith.constant 0 : index
      %12 = vector.load %arg11[%c0_7, %c0_8] : memref<1x128xf32, #tpu.memory_space<vmem>>, vector<1x128xf32>
      %cst_9 = arith.constant dense<0.000000e+00> : vector<128xf32>
      %13 = vector.multi_reduction <add>, %8, %cst_9 [0] : vector<8x128xf32> to vector<128xf32>
      %14 = vector.shape_cast %13 : vector<128xf32> to vector<1x128xf32>
      %15 = arith.addf %12, %14 : vector<1x128xf32>
      %c0_10 = arith.constant 0 : index
      %c0_11 = arith.constant 0 : index
      %16 = vector.load %arg11[%c0_10, %c0_11] : memref<1x128xf32, #tpu.memory_space<vmem>>, vector<1x128xf32>
      tpu.vector_store %arg11[%c0_10, %c0_11], %15 {strides = array<i32>} : memref<1x128xf32, #tpu.memory_space<vmem>>, vector<1x128xf32>,
      %c0_12 = arith.constant 0 : index
      %c0_13 = arith.constant 0 : index
      %17 = vector.load %arg12[%c0_12, %c0_13] : memref<1x128xf32, #tpu.memory_space<vmem>>, vector<1x128xf32>
      %18 = arith.mulf %8, %8 : vector<8x128xf32>
      %cst_14 = arith.constant dense<0.000000e+00> : vector<128xf32>
      %19 = vector.multi_reduction <add>, %18, %cst_14 [0] : vector<8x128xf32> to vector<128xf32>
      %20 = vector.shape_cast %19 : vector<128xf32> to vector<1x128xf32>
      %21 = arith.addf %17, %20 : vector<1x128xf32>
      %c0_15 = arith.constant 0 : index
      %c0_16 = arith.constant 0 : index
      %22 = vector.load %arg12[%c0_15, %c0_16] : memref<1x128xf32, #tpu.memory_space<vmem>>, vector<1x128xf32>
      tpu.vector_store %arg12[%c0_15, %c0_16], %21 {strides = array<i32>} : memref<1x128xf32, #tpu.memory_space<vmem>>, vector<1x128xf32>,
      %c0_i32_17 = arith.constant 0 : i32
      %23 = arith.cmpi eq, %arg1, %c0_i32_17 : i32
      %24 = arith.extui %23 : i1 to i32
      %c0_i32_18 = arith.constant 0 : i32
      %25 = arith.cmpi ne, %24, %c0_i32_18 : i32
      scf.if %25 {
        %c0_19 = arith.constant 0 : index
        %26 = memref.load %arg2[%c0_19] : memref<1xi32, #tpu.memory_space<smem>>
        %27 = arith.sitofp %26 : i32 to f32
        %c0_20 = arith.constant 0 : index
        %c0_21 = arith.constant 0 : index
        %28 = vector.load %arg11[%c0_20, %c0_21] : memref<1x128xf32, #tpu.memory_space<vmem>>, vector<1x128xf32>
        %29 = vector.broadcast %27 : f32 to vector<1x128xf32>
        %30 = arith.divf %28, %29 : vector<1x128xf32>
        %c0_22 = arith.constant 0 : index
        %c0_23 = arith.constant 0 : index
        %31 = vector.load %arg12[%c0_22, %c0_23] : memref<1x128xf32, #tpu.memory_space<vmem>>, vector<1x128xf32>
        %32 = vector.broadcast %27 : f32 to vector<1x128xf32>
        %33 = arith.divf %31, %32 : vector<1x128xf32>
        %34 = arith.mulf %30, %30 : vector<1x128xf32>
        %35 = arith.subf %33, %34 : vector<1x128xf32>
        %cst_24 = arith.constant 0.000000e+00 : f32
        %36 = vector.broadcast %cst_24 : f32 to vector<1x128xf32>
        %37 = arith.maximumf %35, %36 : vector<1x128xf32>
        %c0_25 = arith.constant 0 : index
        %c0_26 = arith.constant 0 : index
        %38 = vector.load %arg5[%c0_25, %c0_26] : memref<1x128xf32, #tpu.memory_space<vmem>>, vector<1x128xf32>
        %cst_27 = arith.constant 9.99999974E-6 : f32
        %39 = vector.broadcast %cst_27 : f32 to vector<1x128xf32>
        %40 = arith.addf %37, %39 : vector<1x128xf32>
        %41 = math.rsqrt %40 : vector<1x128xf32>
        %42 = arith.mulf %38, %41 : vector<1x128xf32>
        %c0_28 = arith.constant 0 : index
        %c0_29 = arith.constant 0 : index
        %43 = vector.load %arg13[%c0_28, %c0_29] : memref<1x128xf32, #tpu.memory_space<vmem>>, vector<1x128xf32>
        tpu.vector_store %arg13[%c0_28, %c0_29], %42 {strides = array<i32>} : memref<1x128xf32, #tpu.memory_space<vmem>>, vector<1x128xf32>,
        %c0_30 = arith.constant 0 : index
        %c0_31 = arith.constant 0 : index
        %44 = vector.load %arg6[%c0_30, %c0_31] : memref<1x128xf32, #tpu.memory_space<vmem>>, vector<1x128xf32>
        %45 = arith.mulf %30, %42 : vector<1x128xf32>
        %46 = arith.subf %44, %45 : vector<1x128xf32>
        %c0_32 = arith.constant 0 : index
        %c0_33 = arith.constant 0 : index
        %47 = vector.load %arg14[%c0_32, %c0_33] : memref<1x128xf32, #tpu.memory_space<vmem>>, vector<1x128xf32>
        tpu.vector_store %arg14[%c0_32, %c0_33], %46 {strides = array<i32>} : memref<1x128xf32, #tpu.memory_space<vmem>>, vector<1x128xf32>,
      } else {
      }
    } else {
    }
    %c1_i32 = arith.constant 1 : i32
    %3 = arith.cmpi eq, %arg0, %c1_i32 : i32
    %4 = arith.extui %3 : i1 to i32
    %c0_i32_1 = arith.constant 0 : i32
    %5 = arith.cmpi ne, %4, %c0_i32_1 : i32
    scf.if %5 {
      %c0 = arith.constant 0 : index
      %c0_2 = arith.constant 0 : index
      %6 = vector.load %arg3[%c0, %c0_2] : memref<8x32xbf16, #tpu.memory_space<vmem>>, vector<8x32xbf16>
      %c0_3 = arith.constant 0 : index
      %c0_4 = arith.constant 0 : index
      %7 = vector.load %arg4[%c0_3, %c0_4] : memref<32x128xbf16, #tpu.memory_space<vmem>>, vector<32x128xbf16>
      %cst = arith.constant dense<0.000000e+00> : vector<8x128xf32>
      %8 = tpu.matmul %6, %7, %cst {dimension_numbers = #tpu.dot_dimension_numbers<[1], [0], [0], [1], [0, 0, 1, 1], [], []>} : vector<8x32xbf16>, vector<32x128xbf16>, vector<8x128xf32> -> vector<8x128xf32>
      %c0_5 = arith.constant 0 : index
      %c0_6 = arith.constant 0 : index
      %9 = vector.load %arg13[%c0_5, %c0_6] : memref<1x128xf32, #tpu.memory_space<vmem>>, vector<1x128xf32>
      %10 = vector.broadcast %9 : vector<1x128xf32> to vector<8x128xf32>
      %11 = arith.mulf %8, %10 : vector<8x128xf32>
      %c0_7 = arith.constant 0 : index
      %c0_8 = arith.constant 0 : index
      %12 = vector.load %arg14[%c0_7, %c0_8] : memref<1x128xf32, #tpu.memory_space<vmem>>, vector<1x128xf32>
      %13 = vector.broadcast %12 : vector<1x128xf32> to vector<8x128xf32>
      %14 = arith.addf %11, %13 : vector<8x128xf32>
      %cst_9 = arith.constant 0.00999999977 : f32
      %15 = vector.broadcast %cst_9 : f32 to vector<8x128xf32>
      %16 = arith.mulf %15, %14 : vector<8x128xf32>
      %17 = arith.maximumf %14, %16 : vector<8x128xf32>
      %18 = arith.truncf %17 : vector<8x128xf32> to vector<8x128xbf16>
      %c0_10 = arith.constant 0 : index
      %c0_11 = arith.constant 0 : index
      %19 = vector.load %arg7[%c0_10, %c0_11] : memref<128x32xbf16, #tpu.memory_space<vmem>>, vector<128x32xbf16>
      %cst_12 = arith.constant dense<0.000000e+00> : vector<8x32xf32>
      %20 = tpu.matmul %18, %19, %cst_12 {dimension_numbers = #tpu.dot_dimension_numbers<[1], [0], [0], [1], [0, 0, 1, 1], [], []>} : vector<8x128xbf16>, vector<128x32xbf16>, vector<8x32xf32> -> vector<8x32xf32>
      %c0_13 = arith.constant 0 : index
      %c0_14 = arith.constant 0 : index
      %21 = vector.load %arg8[%c0_13, %c0_14] : memref<1x32xf32, #tpu.memory_space<vmem>>, vector<1x32xf32>
      %22 = vector.broadcast %21 : vector<1x32xf32> to vector<8x32xf32>
      %23 = arith.addf %20, %22 : vector<8x32xf32>
      %c0_15 = arith.constant 0 : index
      %c0_16 = arith.constant 0 : index
      %24 = vector.load %arg9[%c0_15, %c0_16] : memref<8x32xf32, #tpu.memory_space<vmem>>, vector<8x32xf32>
      tpu.vector_store %arg9[%c0_15, %c0_16], %23 {strides = array<i32>} : memref<8x32xf32, #tpu.memory_space<vmem>>, vector<8x32xf32>,
    } else {
    }
    return
  }
  func.func @transform_0(%arg0: i32, %arg1: i32, %arg2: memref<1xi32, #tpu.memory_space<smem>>) -> (i32, i32) {
    %c0_i32 = arith.constant 0 : i32
    %c0_i32_0 = arith.constant 0 : i32
    return %arg1, %c0_i32 : i32, i32
  }
  func.func @transform_1(%arg0: i32, %arg1: i32, %arg2: memref<1xi32, #tpu.memory_space<smem>>) -> (i32, i32) {
    %c0_i32 = arith.constant 0 : i32
    %c0_i32_0 = arith.constant 0 : i32
    %c0_i32_1 = arith.constant 0 : i32
    return %c0_i32, %c0_i32_0 : i32, i32
  }
  func.func @transform_2(%arg0: i32, %arg1: i32, %arg2: memref<1xi32, #tpu.memory_space<smem>>) -> (i32, i32) {
    %c0_i32 = arith.constant 0 : i32
    %c0_i32_0 = arith.constant 0 : i32
    %c0_i32_1 = arith.constant 0 : i32
    return %c0_i32, %c0_i32_0 : i32, i32
  }
  func.func @transform_3(%arg0: i32, %arg1: i32, %arg2: memref<1xi32, #tpu.memory_space<smem>>) -> (i32, i32) {
    %c0_i32 = arith.constant 0 : i32
    %c0_i32_0 = arith.constant 0 : i32
    %c0_i32_1 = arith.constant 0 : i32
    return %c0_i32, %c0_i32_0 : i32, i32
  }
  func.func @transform_4(%arg0: i32, %arg1: i32, %arg2: memref<1xi32, #tpu.memory_space<smem>>) -> (i32, i32) {
    %c0_i32 = arith.constant 0 : i32
    %c0_i32_0 = arith.constant 0 : i32
    %c0_i32_1 = arith.constant 0 : i32
    return %c0_i32, %c0_i32_0 : i32, i32
  }
  func.func @transform_5(%arg0: i32, %arg1: i32, %arg2: memref<1xi32, #tpu.memory_space<smem>>) -> (i32, i32) {
    %c0_i32 = arith.constant 0 : i32
    %c0_i32_0 = arith.constant 0 : i32
    %c0_i32_1 = arith.constant 0 : i32
    return %c0_i32, %c0_i32_0 : i32, i32
  }
  func.func @transform_6(%arg0: i32, %arg1: i32, %arg2: memref<1xi32, #tpu.memory_space<smem>>) -> (i32, i32) {
    %0 = arith.muli %arg0, %arg1 : i32
    %c0_i32 = arith.constant 0 : i32
    %c0_i32_0 = arith.constant 0 : i32
    return %0, %c0_i32 : i32, i32
  }
}

</mosaic_0001>

<llo_original>
// kernel: tpu_custom_call.1
$region0: #{tpu_custom_call.1}
  #allocation0 [shape = 'u32[]', space=smem, size = 0x4, offset = 0x4, fixed_abs, tag = 'smem constant byte address 0x4 - core index']
  #allocation1 [shape = 'u32[144,128]{1,0:T(1,128)}', space=vmem, size = 0x12000, scoped, tag = 'internal scratch']
  #allocation2 [shape = 'bf16[1,8,32]{2,1,0:T(8,128)(2,1)}', space=vmem, size = 0x800, scoped, tag = 'scratch operand']
  #allocation3 [shape = 'f32[1,128]{1,0:T(1,128)}', space=vmem, size = 0x200, scoped, tag = 'scratch operand']
  #allocation4 [shape = 'f32[1,128]{1,0:T(1,128)}', space=vmem, size = 0x200, scoped, tag = 'scratch operand']
  #allocation5 [shape = 'f32[1,128]{1,0:T(1,128)}', space=vmem, size = 0x200, scoped, tag = 'scratch operand']
  #allocation6 [shape = 'f32[1,128]{1,0:T(1,128)}', space=vmem, size = 0x200, scoped, tag = 'scratch operand']
  #allocation7 [shape = 's32[1]{0}', space=sflag, size = 0x4, scoped, tag = 'scoped memory for tpu_custom_call.1']
  #allocation8 [shape = 's32[1]{0:T(128)S(6)}', space=smem, size = 0x200, scoped, tag = 'prefetched SMEM operand 0']
  %s0 = inlined_call_operand.<no memory space> [shape: s32[1], index: 0, kind: input, shape index: {}]
  %s1 = inlined_call_operand.vmem [shape: bf16[8,32], index: 1, kind: input, shape index: {}]
  %s2 = inlined_call_operand.vmem [shape: bf16[32,128], index: 2, kind: input, shape index: {}]
  %s3 = inlined_call_operand.vmem [shape: f32[1,128], index: 3, kind: input, shape index: {}]
  %s4 = inlined_call_operand.vmem [shape: f32[1,128], index: 4, kind: input, shape index: {}]
  %s5 = inlined_call_operand.vmem [shape: bf16[128,32], index: 5, kind: input, shape index: {}]
  %s6 = inlined_call_operand.vmem [shape: f32[1,32], index: 6, kind: input, shape index: {}]
  %s7 = inlined_call_operand.hbm [shape: f32[8,32], index: 7, kind: output, shape index: {}]
  %s8 = sld [smem:[#allocation0]]
  $region73: #{tpu_custom_call.1} parent=0
    _
  %s10 = ssub.s32 1, %s8
  %s11 = scalar_select 0, %s10, %s8
  %12 = sst [smem:[#allocation8]] %s0
  $region1: #{tpu_custom_call.1} parent=0
    #allocation9 [shape = 'u8[8192]{0}', space=vmem, size = 0x2000, scoped, tag = 'output window, operand 0']
    #allocation10 [shape = 's32[2]{0}', space=sflag, size = 0x8, scoped, tag = 'scoped memory for tpu_custom_call.1']
    %13 = vsyncpa [#allocation10], 0
    %s14 = scalar_lea.sflag [#allocation10], 1
    %15 = vsyncpa %s14, 0
    loop: start=0, step=1, limit=4
    $region2: #{tpu_custom_call.1} parent=1 // loop_pre_header
      _
    $region3: #{tpu_custom_call.1} parent=1 // loop_header
      %s17 = sphi 0, %s21
      %p18 = scmp.ge.s32.totalorder %s17, 4
      %s24 = sphi 0, %s36
      %s25 = sphi 0, %s32
      %s26 = sphi 0, %s24
      %s27 = sphi 0, %s25
      %s28 = sphi 0, %s26
      %s29 = sphi 0, %s27
      %s39 = sphi 0, %s41
      %s42 = sphi 0, %s39
      %s43 = sphi 0, %s42
      %s59 = sphi 0, %s43
      %s63 = sphi 0, %s63
      %s65 = sphi 0, %s63
      %s66 = sphi 0, %s65
      %s80 = sphi 0, %s66
      %s84 = sphi 0, %s84
      %s86 = sphi 0, %s84
      %s87 = sphi 0, %s86
      %s101 = sphi 0, %s87
      %s105 = sphi 0, %s105
      %s107 = sphi 0, %s105
      %s108 = sphi 0, %s107
      %s122 = sphi 0, %s108
      %s126 = sphi 0, %s126
      %s128 = sphi 0, %s126
      %s129 = sphi 0, %s128
      %s143 = sphi 0, %s129
      %s147 = sphi 0, %s147
      %s149 = sphi 0, %s147
      %s150 = sphi 0, %s149
      %s164 = sphi 0, %s150
      %s172 = sphi 0, %s174
      %s175 = sphi 0, %s172
      %s176 = sphi 0, %s175
      %s192 = sphi 0, %s176
    $region4: #{tpu_custom_call.1} parent=1 // loop_header_branch
      %20 = sbr.rel (%p18) target = $region8
    $region5: #{tpu_custom_call.1} parent=1 // loop_body
      %s22 = ssub.s32 %s17, 1
      %s23 = ssub.s32 %s17, 2
      %s30 = sadd.s32 1, %s25
      %p31 = scmp.ge.s32.totalorder %s30, 1
      %s32 = scalar_select %p31, 0, %s30
      %s33 = sadd.s32 1, %s24
      %s34 = scalar_select %p31, %s33, %s24
      %p35 = scmp.ge.s32.totalorder %s34, 2
      %s36 = scalar_select %p35, 0, %s34
      %s37 = ssub.s32 %s25, %s32
      %p38 = scmp.eq.s32.totalorder %s37, 0
      %s40 = sadd.s32 %s39, 1
      %s41 = scalar_select %p38, %s39, %s40
      %p44 = pneg %p38
      %p45 = scmp.eq.s32.totalorder %s17, 1
      %p46 = por %p44, %p45
      %p47 = scmp.ne.s32.totalorder %s39, %s42
      %p48 = scmp.eq.s32.totalorder %s17, 0
      %p49 = por %p47, %p48
      %p50 = scmp.ne.s32.totalorder %s39, %s42
      %p51 = scmp.eq.s32.totalorder %s22, 1
      %p52 = por %p50, %p51
      %p53 = scmp.ne.s32.totalorder %s42, %s43
      %p54 = scmp.eq.s32.totalorder %s22, 0
      %p55 = por %p53, %p54
      %p56 = scmp.ne.s32.totalorder %s42, %s43
      %p57 = scmp.eq.s32.totalorder %s23, 1
      %p58 = por %p56, %p57
      %p60 = scmp.ne.s32.totalorder %s43, %s59
      %p61 = scmp.eq.s32.totalorder %s23, 0
      %p62 = por %p60, %p61
      %s64 = sadd.s32 %s63, 1
      %p67 = scmp.eq.s32.totalorder %s17, 1
      %p68 = scmp.ne.s32.totalorder %s63, %s65
      %p69 = scmp.eq.s32.totalorder %s17, 0
      %p70 = por %p68, %p69
      %p71 = scmp.ne.s32.totalorder %s63, %s65
      %p72 = scmp.eq.s32.totalorder %s22, 1
      %p73 = por %p71, %p72
      %p74 = scmp.ne.s32.totalorder %s65, %s66
      %p75 = scmp.eq.s32.totalorder %s22, 0
      %p76 = por %p74, %p75
      %p77 = scmp.ne.s32.totalorder %s65, %s66
      %p78 = scmp.eq.s32.totalorder %s23, 1
      %p79 = por %p77, %p78
      %p81 = scmp.ne.s32.totalorder %s66, %s80
      %p82 = scmp.eq.s32.totalorder %s23, 0
      %p83 = por %p81, %p82
      %s85 = sadd.s32 %s84, 1
      %p88 = scmp.eq.s32.totalorder %s17, 1
      %p89 = scmp.ne.s32.totalorder %s84, %s86
      %p90 = scmp.eq.s32.totalorder %s17, 0
      %p91 = por %p89, %p90
      %p92 = scmp.ne.s32.totalorder %s84, %s86
      %p93 = scmp.eq.s32.totalorder %s22, 1
      %p94 = por %p92, %p93
      %p95 = scmp.ne.s32.totalorder %s86, %s87
      %p96 = scmp.eq.s32.totalorder %s22, 0
      %p97 = por %p95, %p96
      %p98 = scmp.ne.s32.totalorder %s86, %s87
      %p99 = scmp.eq.s32.totalorder %s23, 1
      %p100 = por %p98, %p99
      %p102 = scmp.ne.s32.totalorder %s87, %s101
      %p103 = scmp.eq.s32.totalorder %s23, 0
      %p104 = por %p102, %p103
      %s106 = sadd.s32 %s105, 1
      %p109 = scmp.eq.s32.totalorder %s17, 1
      %p110 = scmp.ne.s32.totalorder %s105, %s107
      %p111 = scmp.eq.s32.totalorder %s17, 0
      %p112 = por %p110, %p111
      %p113 = scmp.ne.s32.totalorder %s105, %s107
      %p114 = scmp.eq.s32.totalorder %s22, 1
      %p115 = por %p113, %p114
      %p116 = scmp.ne.s32.totalorder %s107, %s108
      %p117 = scmp.eq.s32.totalorder %s22, 0
      %p118 = por %p116, %p117
      %p119 = scmp.ne.s32.totalorder %s107, %s108
      %p120 = scmp.eq.s32.totalorder %s23, 1
      %p121 = por %p119, %p120
      %p123 = scmp.ne.s32.totalorder %s108, %s122
      %p124 = scmp.eq.s32.totalorder %s23, 0
      %p125 = por %p123, %p124
      %s127 = sadd.s32 %s126, 1
      %p130 = scmp.eq.s32.totalorder %s17, 1
      %p131 = scmp.ne.s32.totalorder %s126, %s128
      %p132 = scmp.eq.s32.totalorder %s17, 0
      %p133 = por %p131, %p132
      %p134 = scmp.ne.s32.totalorder %s126, %s128
      %p135 = scmp.eq.s32.totalorder %s22, 1
      %p136 = por %p134, %p135
      %p137 = scmp.ne.s32.totalorder %s128, %s129
      %p138 = scmp.eq.s32.totalorder %s22, 0
      %p139 = por %p137, %p138
      %p140 = scmp.ne.s32.totalorder %s128, %s129
      %p141 = scmp.eq.s32.totalorder %s23, 1
      %p142 = por %p140, %p141
      %p144 = scmp.ne.s32.totalorder %s129, %s143
      %p145 = scmp.eq.s32.totalorder %s23, 0
      %p146 = por %p144, %p145
      %s148 = sadd.s32 %s147, 1
      %p151 = scmp.eq.s32.totalorder %s17, 1
      %p152 = scmp.ne.s32.totalorder %s147, %s149
      %p153 = scmp.eq.s32.totalorder %s17, 0
      %p154 = por %p152, %p153
      %p155 = scmp.ne.s32.totalorder %s147, %s149
      %p156 = scmp.eq.s32.totalorder %s22, 1
      %p157 = por %p155, %p156
      %p158 = scmp.ne.s32.totalorder %s149, %s150
      %p159 = scmp.eq.s32.totalorder %s22, 0
      %p160 = por %p158, %p159
      %p161 = scmp.ne.s32.totalorder %s149, %s150
      %p162 = scmp.eq.s32.totalorder %s23, 1
      %p163 = por %p161, %p162
      %p165 = scmp.ne.s32.totalorder %s150, %s164
      %p166 = scmp.eq.s32.totalorder %s23, 0
      %p167 = por %p165, %p166
      %s168 = smul.u32 %s24, %s25
      %s169 = smul.u32 %s36, %s32
      %s170 = ssub.s32 %s168, %s169
      %p171 = scmp.eq.s32.totalorder %s170, 0
      %s173 = sadd.s32 %s172, 1
      %s174 = scalar_select %p171, %s172, %s173
      %p177 = pneg %p171
      %p178 = scmp.eq.s32.totalorder %s17, 1
      %p179 = por %p177, %p178
      %p180 = scmp.ne.s32.totalorder %s172, %s175
      %p181 = scmp.eq.s32.totalorder %s17, 0
      %p182 = por %p180, %p181
      %p183 = scmp.ne.s32.totalorder %s172, %s175
      %p184 = scmp.eq.s32.totalorder %s22, 1
      %p185 = por %p183, %p184
      %p186 = scmp.ne.s32.totalorder %s175, %s176
      %p187 = scmp.eq.s32.totalorder %s22, 0
      %p188 = por %p186, %p187
      %p189 = scmp.ne.s32.totalorder %s175, %s176
      %p190 = scmp.eq.s32.totalorder %s23, 1
      %p191 = por %p189, %p190
      %p193 = scmp.ne.s32.totalorder %s176, %s192
      %p194 = scmp.eq.s32.totalorder %s23, 0
      %p195 = por %p193, %p194
      %p196 = scmp.le.s32.totalorder 1, %s17
      %p197 = scmp.lt.s32.totalorder %s17, 3
      %p198 = pnand %p196, %p197
      %p199 = pneg %p198
      // Predicated region
      $region9: #{tpu_custom_call.1} parent=5 // pred_check
        _
      $region10: #{tpu_custom_call.1} parent=5 // pred_check_branch
        %201 = sbr.rel (%p198) target = $region12
      $region11: #{tpu_custom_call.1} parent=5 // pred_region
        %s202 = ssub.s32 %s17, 1
        // Predicated region
        $region13: #{tpu_custom_call.1} parent=11 // pred_check
          %p203 = pneg %p55
        $region14: #{tpu_custom_call.1} parent=11 // pred_check_branch
          %205 = sbr.rel (%p203) target = $region16
        $region15: #{tpu_custom_call.1} parent=11 // pred_region
          %p206 = scmp.lt.s32.totalorder %s27, 0
          %s207 = scalar_select %p206, %s27, 0
          %s208 = smul.addr %s207, 4
          %s209 = scalar_lea.vmem %s1, %s208
        $region16: #{tpu_custom_call.1} parent=11 // pred_fallthru
          _
        // Predicated region
        $region17: #{tpu_custom_call.1} parent=11 // pred_check
          %p210 = pneg %p76
        $region18: #{tpu_custom_call.1} parent=11 // pred_check_branch
          %212 = sbr.rel (%p210) target = $region20
        $region19: #{tpu_custom_call.1} parent=11 // pred_region
          _
        $region20: #{tpu_custom_call.1} parent=11 // pred_fallthru
          _
        // Predicated region
        $region21: #{tpu_custom_call.1} parent=11 // pred_check
          %p213 = pneg %p97
        $region22: #{tpu_custom_call.1} parent=11 // pred_check_branch
          %215 = sbr.rel (%p213) target = $region24
        $region23: #{tpu_custom_call.1} parent=11 // pred_region
          _
        $region24: #{tpu_custom_call.1} parent=11 // pred_fallthru
          _
        // Predicated region
        $region25: #{tpu_custom_call.1} parent=11 // pred_check
          %p216 = pneg %p118
        $region26: #{tpu_custom_call.1} parent=11 // pred_check_branch
          %218 = sbr.rel (%p216) target = $region28
        $region27: #{tpu_custom_call.1} parent=11 // pred_region
          _
        $region28: #{tpu_custom_call.1} parent=11 // pred_fallthru
          _
        // Predicated region
        $region29: #{tpu_custom_call.1} parent=11 // pred_check
          %p219 = pneg %p139
        $region30: #{tpu_custom_call.1} parent=11 // pred_check_branch
          %221 = sbr.rel (%p219) target = $region32
        $region31: #{tpu_custom_call.1} parent=11 // pred_region
          _
        $region32: #{tpu_custom_call.1} parent=11 // pred_fallthru
          _
        // Predicated region
        $region33: #{tpu_custom_call.1} parent=11 // pred_check
          %p222 = pneg %p160
        $region34: #{tpu_custom_call.1} parent=11 // pred_check_branch
          %224 = sbr.rel (%p222) target = $region36
        $region35: #{tpu_custom_call.1} parent=11 // pred_region
          _
        $region36: #{tpu_custom_call.1} parent=11 // pred_fallthru
          _
      $region12: #{tpu_custom_call.1} parent=5 // pred_fallthru
        _
      %p225 = scmp.lt.s32.totalorder %s17, 2
      // Predicated region
      $region37: #{tpu_custom_call.1} parent=5 // pred_check
        %p226 = pneg %p225
      $region38: #{tpu_custom_call.1} parent=5 // pred_check_branch
        %228 = sbr.rel (%p226) target = $region40
      $region39: #{tpu_custom_call.1} parent=5 // pred_region
        _
      $region40: #{tpu_custom_call.1} parent=5 // pred_fallthru
        _
      %p229 = scmp.le.s32.totalorder 1, %s17
      %p230 = scmp.lt.s32.totalorder %s17, 3
      %p231 = pnand %p229, %p230
      %p232 = pneg %p231
      // Predicated region
      $region41: #{tpu_custom_call.1} parent=5 // pred_check
        _
      $region42: #{tpu_custom_call.1} parent=5 // pred_check_branch
        %234 = sbr.rel (%p231) target = $region44
      $region43: #{tpu_custom_call.1} parent=5 // pred_region
        %s235 = ssub.s32 %s17, 1
        %p236 = scmp.lt.s32.totalorder %s27, 0
        %s237 = scalar_select %p236, %s27, 0
        %s238 = smul.addr %s237, 4
        %s239 = scalar_lea.vmem %s1, %s238
        %p240 = pneg %p55
        %p241 = pneg %p52
        %p242 = pneg %p76
        %p243 = pneg %p73
        %p244 = pneg %p97
        %p245 = pneg %p94
        %p246 = pneg %p118
        %p247 = pneg %p115
        %p248 = pneg %p139
        %p249 = pneg %p136
        %p250 = pneg %p160
        %p251 = pneg %p157
        %p252 = pneg %p188
        %p253 = pneg %p185
        %s254 = sand.u32 %s175, 1
        %s255 = scalar_lea.sflag [#allocation10], %s254
        %s256 = sand.u32 %s175, 1
        %s257 = smul.addr %s256, 8
        %s258 = scalar_lea.vmem [#allocation9], %s257
        %p259 = scmp.lt.s32.totalorder %s27, 0
        %s260 = scalar_select %p259, %s27, 0
        %s261 = smul.addr %s260, 4
        %s262 = scalar_lea.vmem %s1, %s261
        %s263 = smul.u32 %s26, %s27
        %p265 = scmp.eq.s32.totalorder %s26, 0
        // Predicated region
        $region45: #{tpu_custom_call.1} parent=43 // pred_check
          %p266 = pneg %p265
        $region46: #{tpu_custom_call.1} parent=43 // pred_check_branch
          %268 = sbr.rel (%p266) target = $region48
        $region47: #{tpu_custom_call.1} parent=43 // pred_region
          %v269 = vld [vmem:[%s262] sm:$0xf]
          %v270 = vld [vmem:[%s2] sm:$0xf]
          %v271 = vld [vmem:[%s2 + $0x4] sm:$0xf]
          %v272 = vld [vmem:[%s2 + $0x8] sm:$0xf]
          %v273 = vld [vmem:[%s2 + $0xc] sm:$0xf]
          %v278 = vunpack.c.l.b16 %v270
          %v279 = vunpack.c.l.b16 %v271
          %v280 = vunpack.c.l.b16 %v272
          %v281 = vunpack.c.l.b16 %v273
          %v282 = vpack.c.b16 %v279, %v278
          %v283 = vpack.c.b16 %v281, %v280
          %vm286 = vcmask 261120
          %v288 = vsel %vm286, %v269, 0
          %290 = vmatprep.subr.bf16.mxu0 0
          %291 = vmatpush1.bf16.msra.mxu0 %v282
          %292 = vmatprep.subr.bf16.mxu0 0
          %293 = vmatpush1.bf16.msra.mxu0 %v283
          %294 = vmatprep.subr.bf16.mxu0 0
          %295 = vmatpush1.bf16.msra.mxu0 0
          %296 = vmatprep.subr.bf16.mxu0 0
          %297 = vmatpush1.bf16.msra.mxu0 0
          %298 = vmatprep.subr.bf16.mxu0 0
          %299 = vmatpush1.bf16.msra.mxu0 0
          %300 = vmatprep.subr.bf16.mxu0 0
          %301 = vmatpush1.bf16.msra.mxu0 0
          %302 = vmatprep.subr.bf16.mxu0 0
          %303 = vmatpush1.bf16.msra.mxu0 0
          %304 = vmatprep.subr.bf16.mxu0 0
          %305 = vmatpush1.bf16.msra.mxu0 0
          %306 = vmatprep.subr.bf16.mxu0 0
          %307 = vmatpush1.bf16.msra.mxu0 0
          %308 = vmatprep.subr.bf16.mxu0 0
          %309 = vmatpush1.bf16.msra.mxu0 0
          %310 = vmatprep.subr.bf16.mxu0 0
          %311 = vmatpush1.bf16.msra.mxu0 0
          %312 = vmatprep.subr.bf16.mxu0 0
          %313 = vmatpush1.bf16.msra.mxu0 0
          %314 = vmatprep.subr.bf16.mxu0 0
          %315 = vmatpush1.bf16.msra.mxu0 0
          %316 = vmatprep.subr.bf16.mxu0 0
          %317 = vmatpush1.bf16.msra.mxu0 0
          %318 = vmatprep.subr.bf16.mxu0 0
          %319 = vmatpush1.bf16.msra.mxu0 0
          %320 = vmatprep.subr.bf16.mxu0 0
          %321 = vmatpush1.bf16.msra.mxu0 0
          %322 = vmatprep.mubr.bf16.mxu0 0
          %323 = vmatmul.mubr.bf16.gmra.mrb[0].mxu0 %v288
          %v324 = vpop.f32.mrb[0].mxu0
          %v325 = vadd.f32 0.0, %v324
          %v326 = vpop.f32.mrb[0].mxu0
          %v327 = vpop.f32.mrb[0].mxu0
          %v328 = vpop.f32.mrb[0].mxu0
          %329 = vdwg.mxu0
          %p330 = scmp.eq.s32.totalorder %s27, 0
          // Predicated region
          $region49: #{tpu_custom_call.1} parent=47 // pred_check
            %p331 = pneg %p330
          $region50: #{tpu_custom_call.1} parent=47 // pred_check_branch
            %333 = sbr.rel (%p331) target = $region52
          $region51: #{tpu_custom_call.1} parent=47 // pred_region
            %334 = vst [vmem:[#allocation3] sm:$0x1] 0.0
            %335 = vst [vmem:[#allocation4] sm:$0x1] 0.0
          $region52: #{tpu_custom_call.1} parent=47 // pred_fallthru
            _
          %v336 = vld [vmem:[#allocation3] sm:$0x1]
          %v337 = vrot.slane %v325, 4
          %v338 = vadd.f32 %v325, %v337
          %v339 = vrot.slane %v338, 2
          %v340 = vadd.f32 %v338, %v339
          %v341 = vrot.slane %v340, 1
          %v342 = vadd.f32 %v340, %v341
          %v343 = vadd.f32 %v336, %v342
          %344 = vst [vmem:[#allocation3] sm:$0x1] %v343
          %v345 = vld [vmem:[#allocation4] sm:$0x1]
          %v346 = vmul.f32 %v325, %v325
          %v347 = vrot.slane %v346, 4
          %v348 = vadd.f32 %v346, %v347
          %v349 = vrot.slane %v348, 2
          %v350 = vadd.f32 %v348, %v349
          %v351 = vrot.slane %v350, 1
          %v352 = vadd.f32 %v350, %v351
          %v353 = vadd.f32 %v345, %v352
          %354 = vst [vmem:[#allocation4] sm:$0x1] %v353
          // Predicated region
          $region53: #{tpu_custom_call.1} parent=47 // pred_check
            %p355 = pneg %p330
          $region54: #{tpu_custom_call.1} parent=47 // pred_check_branch
            %357 = sbr.rel (%p355) target = $region56
          $region55: #{tpu_custom_call.1} parent=47 // pred_region
            %s358 = sld [smem:[#allocation8]]
            %s359 = scvt.s32.f32 %s358
            %v360 = vld [vmem:[#allocation3] sm:$0x1]
            %v361 = vstv %s359
            %v362 = vrcp.pop %v361
            %v363 = vmul.f32 %v360, %v362
            %v364 = vld [vmem:[#allocation4] sm:$0x1]
            %v365 = vmul.f32 %v364, %v362
            %v366 = vmul.f32 %v363, %v363
            %v367 = vsub.f32 %v365, %v366
            %v368 = vmax.f32 %v367, 0.0
            %v369 = vld [vmem:[%s3] sm:$0x1]
            %v370 = vadd.f32 %v368, 1e-05
            %v371 = vrsqrt.pop %v370
            %v372 = vmul.f32 %v369, %v371
            %373 = vst [vmem:[#allocation5] sm:$0x1] %v372
            %v374 = vld [vmem:[%s4] sm:$0x1]
            %v375 = vmul.f32 %v363, %v372
            %v376 = vsub.f32 %v374, %v375
            %377 = vst [vmem:[#allocation6] sm:$0x1] %v376
          $region56: #{tpu_custom_call.1} parent=47 // pred_fallthru
            _
        $region48: #{tpu_custom_call.1} parent=43 // pred_fallthru
          _
        %p378 = scmp.eq.s32.totalorder %s26, 1
        // Predicated region
        $region57: #{tpu_custom_call.1} parent=43 // pred_check
          %p379 = pneg %p378
        $region58: #{tpu_custom_call.1} parent=43 // pred_check_branch
          %381 = sbr.rel (%p379) target = $region60
        $region59: #{tpu_custom_call.1} parent=43 // pred_region
          %v382 = vld [vmem:[%s262] sm:$0xf]
          %v383 = vld [vmem:[%s2] sm:$0xf]
          %v384 = vld [vmem:[%s2 + $0x4] sm:$0xf]
          %v385 = vld [vmem:[%s2 + $0x8] sm:$0xf]
          %v386 = vld [vmem:[%s2 + $0xc] sm:$0xf]
          %v391 = vunpack.c.l.b16 %v383
          %v392 = vunpack.c.l.b16 %v384
          %v393 = vunpack.c.l.b16 %v385
          %v394 = vunpack.c.l.b16 %v386
          %v395 = vpack.c.b16 %v392, %v391
          %v396 = vpack.c.b16 %v394, %v393
          %vm399 = vcmask 261120
          %v401 = vsel %vm399, %v382, 0
          %403 = vmatprep.subr.bf16.mxu0 0
          %404 = vmatpush1.bf16.msra.mxu0 %v395
          %405 = vmatprep.subr.bf16.mxu0 0
          %406 = vmatpush1.bf16.msra.mxu0 %v396
          %407 = vmatprep.subr.bf16.mxu0 0
          %408 = vmatpush1.bf16.msra.mxu0 0
          %409 = vmatprep.subr.bf16.mxu0 0
          %410 = vmatpush1.bf16.msra.mxu0 0
          %411 = vmatprep.subr.bf16.mxu0 0
          %412 = vmatpush1.bf16.msra.mxu0 0
          %413 = vmatprep.subr.bf16.mxu0 0
          %414 = vmatpush1.bf16.msra.mxu0 0
          %415 = vmatprep.subr.bf16.mxu0 0
          %416 = vmatpush1.bf16.msra.mxu0 0
          %417 = vmatprep.subr.bf16.mxu0 0
          %418 = vmatpush1.bf16.msra.mxu0 0
          %419 = vmatprep.subr.bf16.mxu0 0
          %420 = vmatpush1.bf16.msra.mxu0 0
          %421 = vmatprep.subr.bf16.mxu0 0
          %422 = vmatpush1.bf16.msra.mxu0 0
          %423 = vmatprep.subr.bf16.mxu0 0
          %424 = vmatpush1.bf16.msra.mxu0 0
          %425 = vmatprep.subr.bf16.mxu0 0
          %426 = vmatpush1.bf16.msra.mxu0 0
          %427 = vmatprep.subr.bf16.mxu0 0
          %428 = vmatpush1.bf16.msra.mxu0 0
          %429 = vmatprep.subr.bf16.mxu0 0
          %430 = vmatpush1.bf16.msra.mxu0 0
          %431 = vmatprep.subr.bf16.mxu0 0
          %432 = vmatpush1.bf16.msra.mxu0 0
          %433 = vmatprep.subr.bf16.mxu0 0
          %434 = vmatpush1.bf16.msra.mxu0 0
          %435 = vmatprep.mubr.bf16.mxu0 0
          %436 = vmatmul.mubr.bf16.gmra.mrb[0].mxu0 %v401
          %v437 = vpop.f32.mrb[0].mxu0
          %v438 = vadd.f32 0.0, %v437
          %v439 = vpop.f32.mrb[0].mxu0
          %v440 = vpop.f32.mrb[0].mxu0
          %v441 = vpop.f32.mrb[0].mxu0
          %442 = vdwg.mxu0
          %v443 = vld [vmem:[#allocation5] sm:$0x1]
          %v445 = vlaneseq
          %v446 = vshrl.u32 %v445, 7
          %v447 = vsub.s32 0, %v446
          %v448 = vrot.slane %v443, %v447
          %v450 = vmul.f32 %v438, %v448
          %v451 = vld [vmem:[#allocation6] sm:$0x1]
          %v453 = vlaneseq
          %v454 = vshrl.u32 %v453, 7
          %v455 = vsub.s32 0, %v454
          %v456 = vrot.slane %v451, %v455
          %v458 = vadd.f32 %v450, %v456
          %v459 = vmul.f32 %v458, 0.01
          %v460 = vmax.f32 %v458, %v459
          %v461 = vpack.c.bf16 %v460, %v460
          %v462 = vld [vmem:[%s5] sm:$0xf]
          %v463 = vld [vmem:[%s5 + $0x4] sm:$0xf]
          %v464 = vld [vmem:[%s5 + $0x8] sm:$0xf]
          %v465 = vld [vmem:[%s5 + $0xc] sm:$0xf]
          %v466 = vld [vmem:[%s5 + $0x10] sm:$0xf]
          %v467 = vld [vmem:[%s5 + $0x14] sm:$0xf]
          %v468 = vld [vmem:[%s5 + $0x18] sm:$0xf]
          %v469 = vld [vmem:[%s5 + $0x1c] sm:$0xf]
          %v470 = vld [vmem:[%s5 + $0x20] sm:$0xf]
          %v471 = vld [vmem:[%s5 + $0x24] sm:$0xf]
          %v472 = vld [vmem:[%s5 + $0x28] sm:$0xf]
          %v473 = vld [vmem:[%s5 + $0x2c] sm:$0xf]
          %v474 = vld [vmem:[%s5 + $0x30] sm:$0xf]
          %v475 = vld [vmem:[%s5 + $0x34] sm:$0xf]
          %v476 = vld [vmem:[%s5 + $0x38] sm:$0xf]
          %v477 = vld [vmem:[%s5 + $0x3c] sm:$0xf]
          %v478 = vld [vmem:[%s6] sm:$0x1]
          %v480 = vlaneseq
          %v481 = vshrl.u32 %v480, 7
          %v482 = vsub.s32 0, %v481
          %v483 = vrot.slane %v478, %v482
          %v501 = vunpack.c.l.b16 %v462
          %v502 = vunpack.c.l.b16 %v463
          %v503 = vunpack.c.l.b16 %v464
          %v504 = vunpack.c.l.b16 %v465
          %v505 = vunpack.c.l.b16 %v466
          %v506 = vunpack.c.l.b16 %v467
          %v507 = vunpack.c.l.b16 %v468
          %v508 = vunpack.c.l.b16 %v469
          %v509 = vunpack.c.l.b16 %v470
          %v510 = vunpack.c.l.b16 %v471
          %v511 = vunpack.c.l.b16 %v472
          %v512 = vunpack.c.l.b16 %v473
          %v513 = vunpack.c.l.b16 %v474
          %v514 = vunpack.c.l.b16 %v475
          %v515 = vunpack.c.l.b16 %v476
          %v516 = vunpack.c.l.b16 %v477
          %v517 = vpack.c.b16 %v502, %v501
          %v518 = vpack.c.b16 %v504, %v503
          %v519 = vpack.c.b16 %v506, %v505
          %v520 = vpack.c.b16 %v508, %v507
          %v521 = vpack.c.b16 %v510, %v509
          %v522 = vpack.c.b16 %v512, %v511
          %v523 = vpack.c.b16 %v514, %v513
          %v524 = vpack.c.b16 %v516, %v515
          %533 = vmatprep.subr.bf16.mxu0 0
          %534 = vmatpush1.bf16.msra.mxu0 %v517
          %535 = vmatprep.subr.bf16.mxu0 0
          %536 = vmatpush1.bf16.msra.mxu0 %v518
          %537 = vmatprep.subr.bf16.mxu0 0
          %538 = vmatpush1.bf16.msra.mxu0 %v519
          %539 = vmatprep.subr.bf16.mxu0 0
          %540 = vmatpush1.bf16.msra.mxu0 %v520
          %541 = vmatprep.subr.bf16.mxu0 0
          %542 = vmatpush1.bf16.msra.mxu0 %v521
          %543 = vmatprep.subr.bf16.mxu0 0
          %544 = vmatpush1.bf16.msra.mxu0 %v522
          %545 = vmatprep.subr.bf16.mxu0 0
          %546 = vmatpush1.bf16.msra.mxu0 %v523
          %547 = vmatprep.subr.bf16.mxu0 0
          %548 = vmatpush1.bf16.msra.mxu0 %v524
          %549 = vmatprep.subr.bf16.mxu0 0
          %550 = vmatpush1.bf16.msra.mxu0 0
          %551 = vmatprep.subr.bf16.mxu0 0
          %552 = vmatpush1.bf16.msra.mxu0 0
          %553 = vmatprep.subr.bf16.mxu0 0
          %554 = vmatpush1.bf16.msra.mxu0 0
          %555 = vmatprep.subr.bf16.mxu0 0
          %556 = vmatpush1.bf16.msra.mxu0 0
          %557 = vmatprep.subr.bf16.mxu0 0
          %558 = vmatpush1.bf16.msra.mxu0 0
          %559 = vmatprep.subr.bf16.mxu0 0
          %560 = vmatpush1.bf16.msra.mxu0 0
          %561 = vmatprep.subr.bf16.mxu0 0
          %562 = vmatpush1.bf16.msra.mxu0 0
          %563 = vmatprep.subr.bf16.mxu0 0
          %564 = vmatpush1.bf16.msra.mxu0 0
          %565 = vmatprep.mubr.bf16.mxu0 0
          %566 = vmatmul.mubr.bf16.gmra.mrb[0].mxu0 %v461
          %v567 = vpop.f32.mrb[0].mxu0
          %v568 = vadd.f32 %v483, %v567
          %v569 = vpop.f32.mrb[0].mxu0
          %v570 = vpop.f32.mrb[0].mxu0
          %v571 = vpop.f32.mrb[0].mxu0
          %572 = vdwg.mxu0
          %573 = vst.msk [vmem:[%s258] sm:$0xff] %vm399, %v568
        $region60: #{tpu_custom_call.1} parent=43 // pred_fallthru
          _
        %s574 = sand.u32 %s175, 1
        %s575 = scalar_lea.sflag [#allocation10], %s574
        %s576 = sand.u32 %s175, 1
        %s577 = smul.addr %s576, 8
        %s578 = scalar_lea.vmem [#allocation9], %s577
        // Predicated region
        $region61: #{tpu_custom_call.1} parent=43 // pred_check
          %p579 = pneg %p185
        $region62: #{tpu_custom_call.1} parent=43 // pred_check_branch
          %581 = sbr.rel (%p579) target = $region64
        $region63: #{tpu_custom_call.1} parent=43 // pred_region
          %s582 = smul.u32 %s26, %s27
          %s584 = ssub.s32 128, 128
          %585 = vsyncadd %s575, %s584
          %s586 = smul.addr %s582, 128
          %s587 = scalar_lea.hbm %s7, %s586
          %s589 = sshll.u32 %s578, 4
          %s590 = int_to_ptr.vmem [resolvable:$true] %s589
          %592 = dma.vmem_to_hbm [thread:$0]  %s590, 128, %s587, %s575
        $region64: #{tpu_custom_call.1} parent=43 // pred_fallthru
          _
      $region44: #{tpu_custom_call.1} parent=5 // pred_fallthru
        _
      %p593 = scmp.le.s32.totalorder 2, %s17
      // Predicated region
      $region65: #{tpu_custom_call.1} parent=5 // pred_check
        %p594 = pneg %p593
      $region66: #{tpu_custom_call.1} parent=5 // pred_check_branch
        %596 = sbr.rel (%p594) target = $region68
      $region67: #{tpu_custom_call.1} parent=5 // pred_region
        %s597 = ssub.s32 %s17, 2
        // Predicated region
        $region69: #{tpu_custom_call.1} parent=67 // pred_check
          %p598 = pneg %p191
        $region70: #{tpu_custom_call.1} parent=67 // pred_check_branch
          %600 = sbr.rel (%p598) target = $region72
        $region71: #{tpu_custom_call.1} parent=67 // pred_region
          %s601 = sand.u32 %s176, 1
          %s602 = scalar_lea.sflag [#allocation10], %s601
          %s603 = sand.u32 %s176, 1
          %s604 = smul.addr %s603, 8
          %s605 = scalar_lea.vmem [#allocation9], %s604
          %606 = dma.done %s602, 128
        $region72: #{tpu_custom_call.1} parent=67 // pred_fallthru
          _
      $region68: #{tpu_custom_call.1} parent=5 // pred_fallthru
        _
    $region6: #{tpu_custom_call.1} parent=1 // loop_footer
      %s21 = sadd.s32 1, %s17
    $region7: #{tpu_custom_call.1} parent=1 // loop_footer_branch
      %16 = sbr.rel target = $region3
    $region8: #{tpu_custom_call.1} parent=1 // loop_exit
      _
    %607 = vsyncpa [#allocation10], 1
    %s608 = scalar_lea.sflag [#allocation10], 1
    %609 = vsyncpa %s608, 1

</llo_original>
